<compile_context>
chip_gen: v7x
topology: tpu7x:2x2x1
jax: 0.10.0
libtpu: 0.0.40
codegen_flags: <defaults>
</compile_context>

<pallas_src>
import functools

import jax
import jax.numpy as jnp
from jax.experimental import pallas as pl
from jax.experimental.pallas import tpu as pltpu


_WEIGHT_ORDER = ("w1", "b1", "w2", "b2", "w3", "b3",
                 "w4", "b4", "w5", "b5", "w6", "b6")


def _ae_kernel(x_ref,
               w1_ref, b1_ref, w2_ref, b2_ref, w3_ref, b3_ref,
               w4_ref, b4_ref, w5_ref, b5_ref, w6_ref, b6_ref,
               out_ref, z_ref):
    """Fused 6-layer MLP (encoder + decoder) for one batch tile."""

    def dense(h, w_ref, b_ref, relu):
        # Cast the activation to the weight dtype (bf16 on the fast path) so the
        # MXU runs in its fast mode; accumulate in f32, add the f32 bias.
        acc = jnp.dot(h.astype(w_ref.dtype), w_ref[...],
                      preferred_element_type=jnp.float32) + b_ref[...]
        return jnp.maximum(acc, 0.0) if relu else acc

    x = x_ref[...]

    # ----- encoder -----
    h = dense(x, w1_ref, b1_ref, relu=True)
    # Dropout(0.2) is identity at inference time (eval-mode forward semantics).
    # TODO(synk): training-mode dropout mask (pltpu.prng_random_bits) not emitted.
    h = dense(h, w2_ref, b2_ref, relu=True)
    z = dense(h, w3_ref, b3_ref, relu=False)           # bottleneck (lane-padded)

    # ----- decoder -----
    d = dense(z, w4_ref, b4_ref, relu=True)
    d = dense(d, w5_ref, b5_ref, relu=True)
    out = dense(d, w6_ref, b6_ref, relu=False)

    out_ref[...] = out.astype(out_ref.dtype)
    z_ref[...] = z.astype(z_ref.dtype)


def _round_up(n, m):
    return ((n + m - 1) // m) * m


def _choose_block_b(batch, in_dim_p, itemsize):
    """Pick the batch tile: big tiles amortize per-grid-step overhead, but cap
    the x/out tile at ~4 MiB so double-buffered I/O stays well inside scoped
    VMEM, and keep >=2 grid steps when possible (v7x megacore sharding)."""
    target = 512
    while target > 8 and target * in_dim_p * itemsize > 4 * 1024 * 1024:
        target //= 2
    if batch <= 8:
        return 8
    half = _round_up((batch + 1) // 2, 8)
    return max(8, min(target, half))


@functools.partial(jax.jit, static_argnames=("block_b", "compute_dtype"))
def ae_forward(x, params, block_b=None, compute_dtype=None):
    """Run the AE forward pass.

    x: (B, in_dim) float32. Returns (out, z) exactly like the PyTorch module.
    compute_dtype=jnp.bfloat16 enables the bf16 MXU fast path (f32 accumulation).
    """
    B, in_dim = x.shape
    bottleneck = params["w3"].shape[1]
    out_dtype = x.dtype

    # Lane-dense padding targets (multiples of 128 on the last dim).
    in_dim_p = _round_up(in_dim, 128)
    bot_p = _round_up(bottleneck, 128)

    cdt = jnp.dtype(compute_dtype) if compute_dtype is not None else jnp.dtype(x.dtype)
    if block_b is None:
        block_b = _choose_block_b(B, in_dim_p, cdt.itemsize)
    B_p = _round_up(B, block_b)

    # ---- normalize / zero-pad parameters (padding keeps numerics identical:
    #      padded w3/b3 columns produce z[:, 50:] == 0, padded w4 rows see zeros) ----
    def pad_to(a, rows, cols):
        pr, pc = rows - a.shape[0], cols - a.shape[1]
        return jnp.pad(a, ((0, pr), (0, pc))) if (pr or pc) else a

    p = {k: (v if v.ndim == 2 else v.reshape(1, -1)) for k, v in params.items()}
    p["w1"] = pad_to(p["w1"], in_dim_p, 128)
    p["w3"] = pad_to(p["w3"], p["w3"].shape[0], bot_p)
    p["b3"] = pad_to(p["b3"], 1, bot_p)
    p["w4"] = pad_to(p["w4"], bot_p, p["w4"].shape[1])
    p["w6"] = pad_to(p["w6"], p["w6"].shape[0], in_dim_p)
    p["b6"] = pad_to(p["b6"], 1, in_dim_p)

    if compute_dtype is not None:
        for k in ("w1", "w2", "w3", "w4", "w5", "w6"):
            p[k] = p[k].astype(cdt)          # biases stay f32 (added post-accumulate)

    # ---- pad / cast the input batch ----
    x_p = x.astype(cdt) if compute_dtype is not None else x
    if (B_p != B) or (in_dim_p != in_dim):
        x_p = jnp.pad(x_p, ((0, B_p - B), (0, in_dim_p - in_dim)))

    # ---- cost estimate (scheduling hint for XLA) ----
    flops_per_row = 2 * (in_dim_p * 128 + 128 * 64 + 64 * bot_p
                         + bot_p * 64 + 64 * 128 + 128 * in_dim_p)
    weight_bytes = sum(int(v.size) * v.dtype.itemsize for v in p.values())
    bytes_accessed = (B_p * in_dim_p * (x_p.dtype.itemsize + out_dtype.itemsize)
                      + B_p * bot_p * out_dtype.itemsize + weight_bytes)
    cost = pl.CostEstimate(flops=int(B_p * flops_per_row),
                           transcendentals=0,
                           bytes_accessed=int(bytes_accessed))

    # Weights/biases: small, full-array blocks with constant index_map
    # (kept resident in VMEM; Pallas does not re-DMA constant-index blocks).
    def full_spec(shape):
        return pl.BlockSpec(shape, lambda i: (0, 0))

    w_specs = [full_spec(p[k].shape) for k in _WEIGHT_ORDER]

    grid = (B_p // block_b,)
    out_p, z_p = pl.pallas_call(
        _ae_kernel,
        out_shape=(
            jax.ShapeDtypeStruct((B_p, in_dim_p), out_dtype),
            jax.ShapeDtypeStruct((B_p, bot_p), out_dtype),
        ),
        grid_spec=pltpu.PrefetchScalarGridSpec(
            num_scalar_prefetch=0,
            grid=grid,
            in_specs=[pl.BlockSpec((block_b, in_dim_p), lambda i: (i, 0))] + w_specs,
            out_specs=[
                pl.BlockSpec((block_b, in_dim_p), lambda i: (i, 0)),
                pl.BlockSpec((block_b, bot_p), lambda i: (i, 0)),
            ],
        ),
        compiler_params=pltpu.CompilerParams(
            dimension_semantics=("parallel",)),
        cost_estimate=cost,
    )(x_p, *[p[k] for k in _WEIGHT_ORDER])

    # Slice the zero-padded rows/lanes back off in the wrapper (cheap XLA slice).
    return out_p[:B, :in_dim], z_p[:B, :bottleneck]


def init_ae_params(key, in_dim, bottleneck=50, dtype=jnp.float32):
    """Deterministic synthetic init (PyTorch Linear-style uniform bounds).
    Weights are stored as (in_features, out_features); biases as (1, out_features)."""
    dims = [(in_dim, 128), (128, 64), (64, bottleneck),
            (bottleneck, 64), (64, 128), (128, in_dim)]
    params = {}
    for idx, (fan_in, fan_out) in enumerate(dims, start=1):
        key, kw, kb = jax.random.split(key, 3)
        bound = 1.0 / jnp.sqrt(jnp.asarray(fan_in, dtype))
        params[f"w{idx}"] = jax.random.uniform(
            kw, (fan_in, fan_out), dtype, minval=-bound, maxval=bound)
        params[f"b{idx}"] = jax.random.uniform(
            kb, (1, fan_out), dtype, minval=-bound, maxval=bound)
    return params


def ae_reference(x, params):
    """Pure-JAX reference for correctness checking."""
    h = jnp.maximum(x @ params["w1"] + params["b1"], 0.0)
    h = jnp.maximum(h @ params["w2"] + params["b2"], 0.0)
    z = h @ params["w3"] + params["b3"]
    d = jnp.maximum(z @ params["w4"] + params["b4"], 0.0)
    d = jnp.maximum(d @ params["w5"] + params["b5"], 0.0)
    out = d @ params["w6"] + params["b6"]
    return out, z


if __name__ == "__main__":
    key = jax.random.PRNGKey(0)
    B, IN_DIM, BOTTLENECK = 16, 256, 50

    kx, kp = jax.random.split(key)
    x = jax.random.normal(kx, (B, IN_DIM), dtype=jnp.float32)
    params = init_ae_params(kp, IN_DIM, BOTTLENECK)

    # f32 path (reference-exact semantics).
    out, z = ae_forward(x, params)
    out = jax.block_until_ready(out)
    z = jax.block_until_ready(z)

    out_ref, z_ref = ae_reference(x, params)
    assert out.shape == (B, IN_DIM) and z.shape == (B, BOTTLENECK)
    assert jnp.allclose(out, out_ref, atol=1e-4, rtol=1e-4)
    assert jnp.allclose(z, z_ref, atol=1e-4, rtol=1e-4)

    # bf16 fast path (v6e/v7x MXU; f32 accumulation) -- looser tolerance.
    out_bf, z_bf = ae_forward(x, params, compute_dtype=jnp.bfloat16)
    out_bf = jax.block_until_ready(out_bf)
    z_bf = jax.block_until_ready(z_bf)
    assert out_bf.shape == (B, IN_DIM) and z_bf.shape == (B, BOTTLENECK)
    assert bool(jnp.all(jnp.isfinite(out_bf))) and bool(jnp.all(jnp.isfinite(z_bf)))
    assert float(jnp.max(jnp.abs(out_bf - out_ref))) < 0.25

    print("KERNEL_OK")
</pallas_src>

<mosaic_0001>
module attributes {stable_mosaic.version = 11 : i64} {
  func.func @_ae_kernel(%arg0: i32, %arg1: memref<8x256xf32, #tpu.memory_space<vmem>>, %arg2: memref<256x128xf32, #tpu.memory_space<vmem>>, %arg3: memref<1x128xf32, #tpu.memory_space<vmem>>, %arg4: memref<128x64xf32, #tpu.memory_space<vmem>>, %arg5: memref<1x64xf32, #tpu.memory_space<vmem>>, %arg6: memref<64x128xf32, #tpu.memory_space<vmem>>, %arg7: memref<1x128xf32, #tpu.memory_space<vmem>>, %arg8: memref<128x64xf32, #tpu.memory_space<vmem>>, %arg9: memref<1x64xf32, #tpu.memory_space<vmem>>, %arg10: memref<64x128xf32, #tpu.memory_space<vmem>>, %arg11: memref<1x128xf32, #tpu.memory_space<vmem>>, %arg12: memref<128x256xf32, #tpu.memory_space<vmem>>, %arg13: memref<1x256xf32, #tpu.memory_space<vmem>>, %arg14: memref<8x256xf32, #tpu.memory_space<vmem>>, %arg15: memref<8x128xf32, #tpu.memory_space<vmem>>) attributes {dimension_semantics = [#tpu.dimension_semantics<parallel>], iteration_bounds = array<i64: 2>, scalar_prefetch = 0 : i64, scratch_operands = 0 : i64, tpu.core_type = #tpu.core_type<tc>, window_params = [{transform_indices = @transform_0, window_bounds = array<i64: 8, 256>}, {pipeline_mode = #tpu.pipeline_mode<synchronous>, transform_indices = @transform_1, window_bounds = array<i64: 256, 128>}, {pipeline_mode = #tpu.pipeline_mode<synchronous>, transform_indices = @transform_2, window_bounds = array<i64: 1, 128>}, {pipeline_mode = #tpu.pipeline_mode<synchronous>, transform_indices = @transform_3, window_bounds = array<i64: 128, 64>}, {pipeline_mode = #tpu.pipeline_mode<synchronous>, transform_indices = @transform_4, window_bounds = array<i64: 1, 64>}, {pipeline_mode = #tpu.pipeline_mode<synchronous>, transform_indices = @transform_5, window_bounds = array<i64: 64, 128>}, {pipeline_mode = #tpu.pipeline_mode<synchronous>, transform_indices = @transform_6, window_bounds = array<i64: 1, 128>}, {pipeline_mode = #tpu.pipeline_mode<synchronous>, transform_indices = @transform_7, window_bounds = array<i64: 128, 64>}, {pipeline_mode = #tpu.pipeline_mode<synchronous>, transform_indices = @transform_8, window_bounds = array<i64: 1, 64>}, {pipeline_mode = #tpu.pipeline_mode<synchronous>, transform_indices = @transform_9, window_bounds = array<i64: 64, 128>}, {pipeline_mode = #tpu.pipeline_mode<synchronous>, transform_indices = @transform_10, window_bounds = array<i64: 1, 128>}, {pipeline_mode = #tpu.pipeline_mode<synchronous>, transform_indices = @transform_11, window_bounds = array<i64: 128, 256>}, {pipeline_mode = #tpu.pipeline_mode<synchronous>, transform_indices = @transform_12, window_bounds = array<i64: 1, 256>}, {transform_indices = @transform_13, window_bounds = array<i64: 8, 256>}, {transform_indices = @transform_14, window_bounds = array<i64: 8, 128>}]} {
    %c0 = arith.constant 0 : index
    %c0_0 = arith.constant 0 : index
    %0 = vector.load %arg1[%c0, %c0_0] : memref<8x256xf32, #tpu.memory_space<vmem>>, vector<8x256xf32>
    %c0_1 = arith.constant 0 : index
    %c0_2 = arith.constant 0 : index
    %1 = vector.load %arg2[%c0_1, %c0_2] : memref<256x128xf32, #tpu.memory_space<vmem>>, vector<256x128xf32>
    %cst = arith.constant dense<0.000000e+00> : vector<8x128xf32>
    %2 = tpu.matmul %0, %1, %cst {dimension_numbers = #tpu.dot_dimension_numbers<[1], [0], [0], [1], [0, 0, 1, 1], [], []>} : vector<8x256xf32>, vector<256x128xf32>, vector<8x128xf32> -> vector<8x128xf32>
    %c0_3 = arith.constant 0 : index
    %c0_4 = arith.constant 0 : index
    %3 = vector.load %arg3[%c0_3, %c0_4] : memref<1x128xf32, #tpu.memory_space<vmem>>, vector<1x128xf32>
    %4 = vector.broadcast %3 : vector<1x128xf32> to vector<8x128xf32>
    %5 = arith.addf %2, %4 : vector<8x128xf32>
    %cst_5 = arith.constant 0.000000e+00 : f32
    %6 = vector.broadcast %cst_5 : f32 to vector<8x128xf32>
    %7 = arith.maximumf %5, %6 : vector<8x128xf32>
    %c0_6 = arith.constant 0 : index
    %c0_7 = arith.constant 0 : index
    %8 = vector.load %arg4[%c0_6, %c0_7] : memref<128x64xf32, #tpu.memory_space<vmem>>, vector<128x64xf32>
    %cst_8 = arith.constant dense<0.000000e+00> : vector<8x64xf32>
    %9 = tpu.matmul %7, %8, %cst_8 {dimension_numbers = #tpu.dot_dimension_numbers<[1], [0], [0], [1], [0, 0, 1, 1], [], []>} : vector<8x128xf32>, vector<128x64xf32>, vector<8x64xf32> -> vector<8x64xf32>
    %c0_9 = arith.constant 0 : index
    %c0_10 = arith.constant 0 : index
    %10 = vector.load %arg5[%c0_9, %c0_10] : memref<1x64xf32, #tpu.memory_space<vmem>>, vector<1x64xf32>
    %11 = vector.broadcast %10 : vector<1x64xf32> to vector<8x64xf32>
    %12 = arith.addf %9, %11 : vector<8x64xf32>
    %cst_11 = arith.constant 0.000000e+00 : f32
    %13 = vector.broadcast %cst_11 : f32 to vector<8x64xf32>
    %14 = arith.maximumf %12, %13 : vector<8x64xf32>
    %c0_12 = arith.constant 0 : index
    %c0_13 = arith.constant 0 : index
    %15 = vector.load %arg6[%c0_12, %c0_13] : memref<64x128xf32, #tpu.memory_space<vmem>>, vector<64x128xf32>
    %cst_14 = arith.constant dense<0.000000e+00> : vector<8x128xf32>
    %16 = tpu.matmul %14, %15, %cst_14 {dimension_numbers = #tpu.dot_dimension_numbers<[1], [0], [0], [1], [0, 0, 1, 1], [], []>} : vector<8x64xf32>, vector<64x128xf32>, vector<8x128xf32> -> vector<8x128xf32>
    %c0_15 = arith.constant 0 : index
    %c0_16 = arith.constant 0 : index
    %17 = vector.load %arg7[%c0_15, %c0_16] : memref<1x128xf32, #tpu.memory_space<vmem>>, vector<1x128xf32>
    %18 = vector.broadcast %17 : vector<1x128xf32> to vector<8x128xf32>
    %19 = arith.addf %16, %18 : vector<8x128xf32>
    %c0_17 = arith.constant 0 : index
    %c0_18 = arith.constant 0 : index
    %20 = vector.load %arg8[%c0_17, %c0_18] : memref<128x64xf32, #tpu.memory_space<vmem>>, vector<128x64xf32>
    %cst_19 = arith.constant dense<0.000000e+00> : vector<8x64xf32>
    %21 = tpu.matmul %19, %20, %cst_19 {dimension_numbers = #tpu.dot_dimension_numbers<[1], [0], [0], [1], [0, 0, 1, 1], [], []>} : vector<8x128xf32>, vector<128x64xf32>, vector<8x64xf32> -> vector<8x64xf32>
    %c0_20 = arith.constant 0 : index
    %c0_21 = arith.constant 0 : index
    %22 = vector.load %arg9[%c0_20, %c0_21] : memref<1x64xf32, #tpu.memory_space<vmem>>, vector<1x64xf32>
    %23 = vector.broadcast %22 : vector<1x64xf32> to vector<8x64xf32>
    %24 = arith.addf %21, %23 : vector<8x64xf32>
    %cst_22 = arith.constant 0.000000e+00 : f32
    %25 = vector.broadcast %cst_22 : f32 to vector<8x64xf32>
    %26 = arith.maximumf %24, %25 : vector<8x64xf32>
    %c0_23 = arith.constant 0 : index
    %c0_24 = arith.constant 0 : index
    %27 = vector.load %arg10[%c0_23, %c0_24] : memref<64x128xf32, #tpu.memory_space<vmem>>, vector<64x128xf32>
    %cst_25 = arith.constant dense<0.000000e+00> : vector<8x128xf32>
    %28 = tpu.matmul %26, %27, %cst_25 {dimension_numbers = #tpu.dot_dimension_numbers<[1], [0], [0], [1], [0, 0, 1, 1], [], []>} : vector<8x64xf32>, vector<64x128xf32>, vector<8x128xf32> -> vector<8x128xf32>
    %c0_26 = arith.constant 0 : index
    %c0_27 = arith.constant 0 : index
    %29 = vector.load %arg11[%c0_26, %c0_27] : memref<1x128xf32, #tpu.memory_space<vmem>>, vector<1x128xf32>
    %30 = vector.broadcast %29 : vector<1x128xf32> to vector<8x128xf32>
    %31 = arith.addf %28, %30 : vector<8x128xf32>
    %cst_28 = arith.constant 0.000000e+00 : f32
    %32 = vector.broadcast %cst_28 : f32 to vector<8x128xf32>
    %33 = arith.maximumf %31, %32 : vector<8x128xf32>
    %c0_29 = arith.constant 0 : index
    %c0_30 = arith.constant 0 : index
    %34 = vector.load %arg12[%c0_29, %c0_30] : memref<128x256xf32, #tpu.memory_space<vmem>>, vector<128x256xf32>
    %cst_31 = arith.constant dense<0.000000e+00> : vector<8x256xf32>
    %35 = tpu.matmul %33, %34, %cst_31 {dimension_numbers = #tpu.dot_dimension_numbers<[1], [0], [0], [1], [0, 0, 1, 1], [], []>} : vector<8x128xf32>, vector<128x256xf32>, vector<8x256xf32> -> vector<8x256xf32>
    %c0_32 = arith.constant 0 : index
    %c0_33 = arith.constant 0 : index
    %36 = vector.load %arg13[%c0_32, %c0_33] : memref<1x256xf32, #tpu.memory_space<vmem>>, vector<1x256xf32>
    %37 = vector.broadcast %36 : vector<1x256xf32> to vector<8x256xf32>
    %38 = arith.addf %35, %37 : vector<8x256xf32>
    %c0_34 = arith.constant 0 : index
    %c0_35 = arith.constant 0 : index
    %39 = vector.load %arg14[%c0_34, %c0_35] : memref<8x256xf32, #tpu.memory_space<vmem>>, vector<8x256xf32>
    tpu.vector_store %arg14[%c0_34, %c0_35], %38 {strides = array<i32>} : memref<8x256xf32, #tpu.memory_space<vmem>>, vector<8x256xf32>,
    %c0_36 = arith.constant 0 : index
    %c0_37 = arith.constant 0 : index
    %40 = vector.load %arg15[%c0_36, %c0_37] : memref<8x128xf32, #tpu.memory_space<vmem>>, vector<8x128xf32>
    tpu.vector_store %arg15[%c0_36, %c0_37], %19 {strides = array<i32>} : memref<8x128xf32, #tpu.memory_space<vmem>>, vector<8x128xf32>,
    return
  }
  func.func @transform_0(%arg0: i32) -> (i32, i32) {
    %c0_i32 = arith.constant 0 : i32
    %c0_i32_0 = arith.constant 0 : i32
    return %arg0, %c0_i32 : i32, i32
  }
  func.func @transform_1(%arg0: i32) -> (i32, i32) {
    %c0_i32 = arith.constant 0 : i32
    %c0_i32_0 = arith.constant 0 : i32
    %c0_i32_1 = arith.constant 0 : i32
    return %c0_i32, %c0_i32_0 : i32, i32
  }
  func.func @transform_2(%arg0: i32) -> (i32, i32) {
    %c0_i32 = arith.constant 0 : i32
    %c0_i32_0 = arith.constant 0 : i32
    %c0_i32_1 = arith.constant 0 : i32
    return %c0_i32, %c0_i32_0 : i32, i32
  }
  func.func @transform_3(%arg0: i32) -> (i32, i32) {
    %c0_i32 = arith.constant 0 : i32
    %c0_i32_0 = arith.constant 0 : i32
    %c0_i32_1 = arith.constant 0 : i32
    return %c0_i32, %c0_i32_0 : i32, i32
  }
  func.func @transform_4(%arg0: i32) -> (i32, i32) {
    %c0_i32 = arith.constant 0 : i32
    %c0_i32_0 = arith.constant 0 : i32
    %c0_i32_1 = arith.constant 0 : i32
    return %c0_i32, %c0_i32_0 : i32, i32
  }
  func.func @transform_5(%arg0: i32) -> (i32, i32) {
    %c0_i32 = arith.constant 0 : i32
    %c0_i32_0 = arith.constant 0 : i32
    %c0_i32_1 = arith.constant 0 : i32
    return %c0_i32, %c0_i32_0 : i32, i32
  }
  func.func @transform_6(%arg0: i32) -> (i32, i32) {
    %c0_i32 = arith.constant 0 : i32
    %c0_i32_0 = arith.constant 0 : i32
    %c0_i32_1 = arith.constant 0 : i32
    return %c0_i32, %c0_i32_0 : i32, i32
  }
  func.func @transform_7(%arg0: i32) -> (i32, i32) {
    %c0_i32 = arith.constant 0 : i32
    %c0_i32_0 = arith.constant 0 : i32
    %c0_i32_1 = arith.constant 0 : i32
    return %c0_i32, %c0_i32_0 : i32, i32
  }
  func.func @transform_8(%arg0: i32) -> (i32, i32) {
    %c0_i32 = arith.constant 0 : i32
    %c0_i32_0 = arith.constant 0 : i32
    %c0_i32_1 = arith.constant 0 : i32
    return %c0_i32, %c0_i32_0 : i32, i32
  }
  func.func @transform_9(%arg0: i32) -> (i32, i32) {
    %c0_i32 = arith.constant 0 : i32
    %c0_i32_0 = arith.constant 0 : i32
    %c0_i32_1 = arith.constant 0 : i32
    return %c0_i32, %c0_i32_0 : i32, i32
  }
  func.func @transform_10(%arg0: i32) -> (i32, i32) {
    %c0_i32 = arith.constant 0 : i32
    %c0_i32_0 = arith.constant 0 : i32
    %c0_i32_1 = arith.constant 0 : i32
    return %c0_i32, %c0_i32_0 : i32, i32
  }
  func.func @transform_11(%arg0: i32) -> (i32, i32) {
    %c0_i32 = arith.constant 0 : i32
    %c0_i32_0 = arith.constant 0 : i32
    %c0_i32_1 = arith.constant 0 : i32
    return %c0_i32, %c0_i32_0 : i32, i32
  }
  func.func @transform_12(%arg0: i32) -> (i32, i32) {
    %c0_i32 = arith.constant 0 : i32
    %c0_i32_0 = arith.constant 0 : i32
    %c0_i32_1 = arith.constant 0 : i32
    return %c0_i32, %c0_i32_0 : i32, i32
  }
  func.func @transform_13(%arg0: i32) -> (i32, i32) {
    %c0_i32 = arith.constant 0 : i32
    %c0_i32_0 = arith.constant 0 : i32
    return %arg0, %c0_i32 : i32, i32
  }
  func.func @transform_14(%arg0: i32) -> (i32, i32) {
    %c0_i32 = arith.constant 0 : i32
    %c0_i32_0 = arith.constant 0 : i32
    return %arg0, %c0_i32 : i32, i32
  }
}

</mosaic_0001>

<llo_original>
// kernel: ae_forward.1
$region0: #{ae_forward.1}
  #allocation0 [shape = 'u32[]', space=smem, size = 0x4, offset = 0x4, fixed_abs, tag = 'smem constant byte address 0x4 - core index']
  #allocation1 [shape = 'u32[144,128]{1,0:T(1,128)}', space=vmem, size = 0x12000, scoped, tag = 'internal scratch']
  %s0 = inlined_call_operand.hbm [shape: f32[16,256], index: 0, kind: input, shape index: {}]
  %s1 = inlined_call_operand.vmem [shape: f32[256,128], index: 1, kind: input, shape index: {}]
  %s2 = inlined_call_operand.vmem [shape: f32[1,128], index: 2, kind: input, shape index: {}]
  %s3 = inlined_call_operand.vmem [shape: f32[128,64], index: 3, kind: input, shape index: {}]
  %s4 = inlined_call_operand.hbm [shape: f32[1,64], index: 4, kind: input, shape index: {}]
  %s5 = inlined_call_operand.vmem [shape: f32[64,128], index: 5, kind: input, shape index: {}]
  %s6 = inlined_call_operand.vmem [shape: f32[1,128], index: 6, kind: input, shape index: {}]
  %s7 = inlined_call_operand.vmem [shape: f32[128,64], index: 7, kind: input, shape index: {}]
  %s8 = inlined_call_operand.hbm [shape: f32[1,64], index: 8, kind: input, shape index: {}]
  %s9 = inlined_call_operand.vmem [shape: f32[64,128], index: 9, kind: input, shape index: {}]
  %s10 = inlined_call_operand.vmem [shape: f32[1,128], index: 10, kind: input, shape index: {}]
  %s11 = inlined_call_operand.vmem [shape: f32[128,256], index: 11, kind: input, shape index: {}]
  %s12 = inlined_call_operand.vmem [shape: f32[1,256], index: 12, kind: input, shape index: {}]
  %s13 = inlined_call_operand.hbm [shape: f32[16,256], index: 13, kind: output, shape index: {0}]
  %s14 = inlined_call_operand.hbm [shape: f32[16,128], index: 14, kind: output, shape index: {1}]
  %15 = xla_tuple %s13, %s14
  %s16 = sld [smem:[#allocation0]]
  $region105: #{ae_forward.1} parent=0
    _
  %s18 = ssub.s32 1, %s16
  %s19 = scalar_select 0, %s18, %s16
  $region1: #{ae_forward.1} parent=0
    #allocation2 [shape = 'u8[16384]{0}', space=vmem, size = 0x4000, scoped, tag = 'input window, operand 0']
    #allocation3 [shape = 's32[2]{0}', space=sflag, size = 0x8, scoped, tag = 'scoped memory for ae_forward.1']
    #allocation4 [shape = 's32[2]{0}', space=sflag, size = 0x8, scoped, tag = 'scoped memory for ae_forward.1']
    #allocation5 [shape = 'u8[512]{0}', space=vmem, size = 0x400, scoped, tag = 'input window, operand 4, single buffered']
    #allocation6 [shape = 's32[1]{0}', space=sflag, size = 0x4, scoped, tag = 'scoped memory for ae_forward.1']
    #allocation7 [shape = 'u8[512]{0}', space=vmem, size = 0x400, scoped, tag = 'input window, operand 8, single buffered']
    #allocation8 [shape = 'u8[16384]{0}', space=vmem, size = 0x4000, scoped, tag = 'output window, operand 0']
    #allocation9 [shape = 'u8[8192]{0}', space=vmem, size = 0x2000, scoped, tag = 'output window, operand 1']
    #allocation10 [shape = 's32[2]{0}', space=sflag, size = 0x8, scoped, tag = 'scoped memory for ae_forward.1']
    %20 = vsyncpa [#allocation3], 0
    %s21 = scalar_lea.sflag [#allocation3], 1
    %22 = vsyncpa %s21, 0
    %23 = vsyncpa [#allocation6], 0
    %24 = vsyncpa [#allocation4], 0
    %s25 = scalar_lea.sflag [#allocation4], 1
    %26 = vsyncpa %s25, 0
    %27 = vsyncpa [#allocation10], 0
    %s28 = scalar_lea.sflag [#allocation10], 1
    %29 = vsyncpa %s28, 0
    loop: start=0, step=1, limit=4
    $region2: #{ae_forward.1} parent=1 // loop_pre_header
      _
    $region3: #{ae_forward.1} parent=1 // loop_header
      %s31 = sphi 0, %s35
      %p32 = scmp.ge.s32.totalorder %s31, 4
      %s41 = sphi 0, %s43
      %s44 = sphi 0, %s41
      %s45 = sphi 0, %s44
      %s61 = sphi 0, %s45
      %s65 = sphi 0, %s65
      %s67 = sphi 0, %s65
      %s68 = sphi 0, %s67
      %s82 = sphi 0, %s68
      %s86 = sphi 0, %s86
      %s88 = sphi 0, %s86
      %s89 = sphi 0, %s88
      %s103 = sphi 0, %s89
      %s107 = sphi 0, %s107
      %s109 = sphi 0, %s107
      %s110 = sphi 0, %s109
      %s124 = sphi 0, %s110
      %s128 = sphi 0, %s128
      %s130 = sphi 0, %s128
      %s131 = sphi 0, %s130
      %s145 = sphi 0, %s131
      %s149 = sphi 0, %s149
      %s151 = sphi 0, %s149
      %s152 = sphi 0, %s151
      %s166 = sphi 0, %s152
      %s170 = sphi 0, %s170
      %s172 = sphi 0, %s170
      %s173 = sphi 0, %s172
      %s187 = sphi 0, %s173
      %s191 = sphi 0, %s191
      %s193 = sphi 0, %s191
      %s194 = sphi 0, %s193
      %s208 = sphi 0, %s194
      %s212 = sphi 0, %s212
      %s214 = sphi 0, %s212
      %s215 = sphi 0, %s214
      %s229 = sphi 0, %s215
      %s233 = sphi 0, %s233
      %s235 = sphi 0, %s233
      %s236 = sphi 0, %s235
      %s250 = sphi 0, %s236
      %s254 = sphi 0, %s254
      %s256 = sphi 0, %s254
      %s257 = sphi 0, %s256
      %s271 = sphi 0, %s257
      %s275 = sphi 0, %s275
      %s277 = sphi 0, %s275
      %s278 = sphi 0, %s277
      %s292 = sphi 0, %s278
      %s296 = sphi 0, %s296
      %s298 = sphi 0, %s296
      %s299 = sphi 0, %s298
      %s313 = sphi 0, %s299
      %s319 = sphi 0, %s321
      %s322 = sphi 0, %s319
      %s323 = sphi 0, %s322
      %s339 = sphi 0, %s323
      %s345 = sphi 0, %s347
      %s348 = sphi 0, %s345
      %s349 = sphi 0, %s348
      %s365 = sphi 0, %s349
    $region4: #{ae_forward.1} parent=1 // loop_header_branch
      %34 = sbr.rel (%p32) target = $region8
    $region5: #{ae_forward.1} parent=1 // loop_body
      %s36 = ssub.s32 %s31, 1
      %s37 = ssub.s32 %s31, 2
      %s38 = sadd.s32 %s31, 1
      %s39 = ssub.s32 %s31, %s38
      %p40 = scmp.eq.s32.totalorder %s39, 0
      %s42 = sadd.s32 %s41, 1
      %s43 = scalar_select %p40, %s41, %s42
      %p46 = pneg %p40
      %p47 = scmp.eq.s32.totalorder %s31, 1
      %p48 = por %p46, %p47
      %p49 = scmp.ne.s32.totalorder %s41, %s44
      %p50 = scmp.eq.s32.totalorder %s31, 0
      %p51 = por %p49, %p50
      %p52 = scmp.ne.s32.totalorder %s41, %s44
      %p53 = scmp.eq.s32.totalorder %s36, 1
      %p54 = por %p52, %p53
      %p55 = scmp.ne.s32.totalorder %s44, %s45
      %p56 = scmp.eq.s32.totalorder %s36, 0
      %p57 = por %p55, %p56
      %p58 = scmp.ne.s32.totalorder %s44, %s45
      %p59 = scmp.eq.s32.totalorder %s37, 1
      %p60 = por %p58, %p59
      %p62 = scmp.ne.s32.totalorder %s45, %s61
      %p63 = scmp.eq.s32.totalorder %s37, 0
      %p64 = por %p62, %p63
      %s66 = sadd.s32 %s65, 1
      %p69 = scmp.eq.s32.totalorder %s31, 1
      %p70 = scmp.ne.s32.totalorder %s65, %s67
      %p71 = scmp.eq.s32.totalorder %s31, 0
      %p72 = por %p70, %p71
      %p73 = scmp.ne.s32.totalorder %s65, %s67
      %p74 = scmp.eq.s32.totalorder %s36, 1
      %p75 = por %p73, %p74
      %p76 = scmp.ne.s32.totalorder %s67, %s68
      %p77 = scmp.eq.s32.totalorder %s36, 0
      %p78 = por %p76, %p77
      %p79 = scmp.ne.s32.totalorder %s67, %s68
      %p80 = scmp.eq.s32.totalorder %s37, 1
      %p81 = por %p79, %p80
      %p83 = scmp.ne.s32.totalorder %s68, %s82
      %p84 = scmp.eq.s32.totalorder %s37, 0
      %p85 = por %p83, %p84
      %s87 = sadd.s32 %s86, 1
      %p90 = scmp.eq.s32.totalorder %s31, 1
      %p91 = scmp.ne.s32.totalorder %s86, %s88
      %p92 = scmp.eq.s32.totalorder %s31, 0
      %p93 = por %p91, %p92
      %p94 = scmp.ne.s32.totalorder %s86, %s88
      %p95 = scmp.eq.s32.totalorder %s36, 1
      %p96 = por %p94, %p95
      %p97 = scmp.ne.s32.totalorder %s88, %s89
      %p98 = scmp.eq.s32.totalorder %s36, 0
      %p99 = por %p97, %p98
      %p100 = scmp.ne.s32.totalorder %s88, %s89
      %p101 = scmp.eq.s32.totalorder %s37, 1
      %p102 = por %p100, %p101
      %p104 = scmp.ne.s32.totalorder %s89, %s103
      %p105 = scmp.eq.s32.totalorder %s37, 0
      %p106 = por %p104, %p105
      %s108 = sadd.s32 %s107, 1
      %p111 = scmp.eq.s32.totalorder %s31, 1
      %p112 = scmp.ne.s32.totalorder %s107, %s109
      %p113 = scmp.eq.s32.totalorder %s31, 0
      %p114 = por %p112, %p113
      %p115 = scmp.ne.s32.totalorder %s107, %s109
      %p116 = scmp.eq.s32.totalorder %s36, 1
      %p117 = por %p115, %p116
      %p118 = scmp.ne.s32.totalorder %s109, %s110
      %p119 = scmp.eq.s32.totalorder %s36, 0
      %p120 = por %p118, %p119
      %p121 = scmp.ne.s32.totalorder %s109, %s110
      %p122 = scmp.eq.s32.totalorder %s37, 1
      %p123 = por %p121, %p122
      %p125 = scmp.ne.s32.totalorder %s110, %s124
      %p126 = scmp.eq.s32.totalorder %s37, 0
      %p127 = por %p125, %p126
      %s129 = sadd.s32 %s128, 1
      %p132 = scmp.eq.s32.totalorder %s31, 1
      %p133 = scmp.ne.s32.totalorder %s128, %s130
      %p134 = scmp.eq.s32.totalorder %s31, 0
      %p135 = por %p133, %p134
      %p136 = scmp.ne.s32.totalorder %s128, %s130
      %p137 = scmp.eq.s32.totalorder %s36, 1
      %p138 = por %p136, %p137
      %p139 = scmp.ne.s32.totalorder %s130, %s131
      %p140 = scmp.eq.s32.totalorder %s36, 0
      %p141 = por %p139, %p140
      %p142 = scmp.ne.s32.totalorder %s130, %s131
      %p143 = scmp.eq.s32.totalorder %s37, 1
      %p144 = por %p142, %p143
      %p146 = scmp.ne.s32.totalorder %s131, %s145
      %p147 = scmp.eq.s32.totalorder %s37, 0
      %p148 = por %p146, %p147
      %s150 = sadd.s32 %s149, 1
      %p153 = scmp.eq.s32.totalorder %s31, 1
      %p154 = scmp.ne.s32.totalorder %s149, %s151
      %p155 = scmp.eq.s32.totalorder %s31, 0
      %p156 = por %p154, %p155
      %p157 = scmp.ne.s32.totalorder %s149, %s151
      %p158 = scmp.eq.s32.totalorder %s36, 1
      %p159 = por %p157, %p158
      %p160 = scmp.ne.s32.totalorder %s151, %s152
      %p161 = scmp.eq.s32.totalorder %s36, 0
      %p162 = por %p160, %p161
      %p163 = scmp.ne.s32.totalorder %s151, %s152
      %p164 = scmp.eq.s32.totalorder %s37, 1
      %p165 = por %p163, %p164
      %p167 = scmp.ne.s32.totalorder %s152, %s166
      %p168 = scmp.eq.s32.totalorder %s37, 0
      %p169 = por %p167, %p168
      %s171 = sadd.s32 %s170, 1
      %p174 = scmp.eq.s32.totalorder %s31, 1
      %p175 = scmp.ne.s32.totalorder %s170, %s172
      %p176 = scmp.eq.s32.totalorder %s31, 0
      %p177 = por %p175, %p176
      %p178 = scmp.ne.s32.totalorder %s170, %s172
      %p179 = scmp.eq.s32.totalorder %s36, 1
      %p180 = por %p178, %p179
      %p181 = scmp.ne.s32.totalorder %s172, %s173
      %p182 = scmp.eq.s32.totalorder %s36, 0
      %p183 = por %p181, %p182
      %p184 = scmp.ne.s32.totalorder %s172, %s173
      %p185 = scmp.eq.s32.totalorder %s37, 1
      %p186 = por %p184, %p185
      %p188 = scmp.ne.s32.totalorder %s173, %s187
      %p189 = scmp.eq.s32.totalorder %s37, 0
      %p190 = por %p188, %p189
      %s192 = sadd.s32 %s191, 1
      %p195 = scmp.eq.s32.totalorder %s31, 1
      %p196 = scmp.ne.s32.totalorder %s191, %s193
      %p197 = scmp.eq.s32.totalorder %s31, 0
      %p198 = por %p196, %p197
      %p199 = scmp.ne.s32.totalorder %s191, %s193
      %p200 = scmp.eq.s32.totalorder %s36, 1
      %p201 = por %p199, %p200
      %p202 = scmp.ne.s32.totalorder %s193, %s194
      %p203 = scmp.eq.s32.totalorder %s36, 0
      %p204 = por %p202, %p203
      %p205 = scmp.ne.s32.totalorder %s193, %s194
      %p206 = scmp.eq.s32.totalorder %s37, 1
      %p207 = por %p205, %p206
      %p209 = scmp.ne.s32.totalorder %s194, %s208
      %p210 = scmp.eq.s32.totalorder %s37, 0
      %p211 = por %p209, %p210
      %s213 = sadd.s32 %s212, 1
      %p216 = scmp.eq.s32.totalorder %s31, 1
      %p217 = scmp.ne.s32.totalorder %s212, %s214
      %p218 = scmp.eq.s32.totalorder %s31, 0
      %p219 = por %p217, %p218
      %p220 = scmp.ne.s32.totalorder %s212, %s214
      %p221 = scmp.eq.s32.totalorder %s36, 1
      %p222 = por %p220, %p221
      %p223 = scmp.ne.s32.totalorder %s214, %s215
      %p224 = scmp.eq.s32.totalorder %s36, 0
      %p225 = por %p223, %p224
      %p226 = scmp.ne.s32.totalorder %s214, %s215
      %p227 = scmp.eq.s32.totalorder %s37, 1
      %p228 = por %p226, %p227
      %p230 = scmp.ne.s32.totalorder %s215, %s229
      %p231 = scmp.eq.s32.totalorder %s37, 0
      %p232 = por %p230, %p231
      %s234 = sadd.s32 %s233, 1
      %p237 = scmp.eq.s32.totalorder %s31, 1
      %p238 = scmp.ne.s32.totalorder %s233, %s235
      %p239 = scmp.eq.s32.totalorder %s31, 0
      %p240 = por %p238, %p239
      %p241 = scmp.ne.s32.totalorder %s233, %s235
      %p242 = scmp.eq.s32.totalorder %s36, 1
      %p243 = por %p241, %p242
      %p244 = scmp.ne.s32.totalorder %s235, %s236
      %p245 = scmp.eq.s32.totalorder %s36, 0
      %p246 = por %p244, %p245
      %p247 = scmp.ne.s32.totalorder %s235, %s236
      %p248 = scmp.eq.s32.totalorder %s37, 1
      %p249 = por %p247, %p248
      %p251 = scmp.ne.s32.totalorder %s236, %s250
      %p252 = scmp.eq.s32.totalorder %s37, 0
      %p253 = por %p251, %p252
      %s255 = sadd.s32 %s254, 1
      %p258 = scmp.eq.s32.totalorder %s31, 1
      %p259 = scmp.ne.s32.totalorder %s254, %s256
      %p260 = scmp.eq.s32.totalorder %s31, 0
      %p261 = por %p259, %p260
      %p262 = scmp.ne.s32.totalorder %s254, %s256
      %p263 = scmp.eq.s32.totalorder %s36, 1
      %p264 = por %p262, %p263
      %p265 = scmp.ne.s32.totalorder %s256, %s257
      %p266 = scmp.eq.s32.totalorder %s36, 0
      %p267 = por %p265, %p266
      %p268 = scmp.ne.s32.totalorder %s256, %s257
      %p269 = scmp.eq.s32.totalorder %s37, 1
      %p270 = por %p268, %p269
      %p272 = scmp.ne.s32.totalorder %s257, %s271
      %p273 = scmp.eq.s32.totalorder %s37, 0
      %p274 = por %p272, %p273
      %s276 = sadd.s32 %s275, 1
      %p279 = scmp.eq.s32.totalorder %s31, 1
      %p280 = scmp.ne.s32.totalorder %s275, %s277
      %p281 = scmp.eq.s32.totalorder %s31, 0
      %p282 = por %p280, %p281
      %p283 = scmp.ne.s32.totalorder %s275, %s277
      %p284 = scmp.eq.s32.totalorder %s36, 1
      %p285 = por %p283, %p284
      %p286 = scmp.ne.s32.totalorder %s277, %s278
      %p287 = scmp.eq.s32.totalorder %s36, 0
      %p288 = por %p286, %p287
      %p289 = scmp.ne.s32.totalorder %s277, %s278
      %p290 = scmp.eq.s32.totalorder %s37, 1
      %p291 = por %p289, %p290
      %p293 = scmp.ne.s32.totalorder %s278, %s292
      %p294 = scmp.eq.s32.totalorder %s37, 0
      %p295 = por %p293, %p294
      %s297 = sadd.s32 %s296, 1
      %p300 = scmp.eq.s32.totalorder %s31, 1
      %p301 = scmp.ne.s32.totalorder %s296, %s298
      %p302 = scmp.eq.s32.totalorder %s31, 0
      %p303 = por %p301, %p302
      %p304 = scmp.ne.s32.totalorder %s296, %s298
      %p305 = scmp.eq.s32.totalorder %s36, 1
      %p306 = por %p304, %p305
      %p307 = scmp.ne.s32.totalorder %s298, %s299
      %p308 = scmp.eq.s32.totalorder %s36, 0
      %p309 = por %p307, %p308
      %p310 = scmp.ne.s32.totalorder %s298, %s299
      %p311 = scmp.eq.s32.totalorder %s37, 1
      %p312 = por %p310, %p311
      %p314 = scmp.ne.s32.totalorder %s299, %s313
      %p315 = scmp.eq.s32.totalorder %s37, 0
      %p316 = por %p314, %p315
      %s317 = ssub.s32 %s31, %s38
      %p318 = scmp.eq.s32.totalorder %s317, 0
      %s320 = sadd.s32 %s319, 1
      %s321 = scalar_select %p318, %s319, %s320
      %p324 = pneg %p318
      %p325 = scmp.eq.s32.totalorder %s31, 1
      %p326 = por %p324, %p325
      %p327 = scmp.ne.s32.totalorder %s319, %s322
      %p328 = scmp.eq.s32.totalorder %s31, 0
      %p329 = por %p327, %p328
      %p330 = scmp.ne.s32.totalorder %s319, %s322
      %p331 = scmp.eq.s32.totalorder %s36, 1
      %p332 = por %p330, %p331
      %p333 = scmp.ne.s32.totalorder %s322, %s323
      %p334 = scmp.eq.s32.totalorder %s36, 0
      %p335 = por %p333, %p334
      %p336 = scmp.ne.s32.totalorder %s322, %s323
      %p337 = scmp.eq.s32.totalorder %s37, 1
      %p338 = por %p336, %p337
      %p340 = scmp.ne.s32.totalorder %s323, %s339
      %p341 = scmp.eq.s32.totalorder %s37, 0
      %p342 = por %p340, %p341
      %s343 = ssub.s32 %s31, %s38
      %p344 = scmp.eq.s32.totalorder %s343, 0
      %s346 = sadd.s32 %s345, 1
      %s347 = scalar_select %p344, %s345, %s346
      %p350 = pneg %p344
      %p351 = scmp.eq.s32.totalorder %s31, 1
      %p352 = por %p350, %p351
      %p353 = scmp.ne.s32.totalorder %s345, %s348
      %p354 = scmp.eq.s32.totalorder %s31, 0
      %p355 = por %p353, %p354
      %p356 = scmp.ne.s32.totalorder %s345, %s348
      %p357 = scmp.eq.s32.totalorder %s36, 1
      %p358 = por %p356, %p357
      %p359 = scmp.ne.s32.totalorder %s348, %s349
      %p360 = scmp.eq.s32.totalorder %s36, 0
      %p361 = por %p359, %p360
      %p362 = scmp.ne.s32.totalorder %s348, %s349
      %p363 = scmp.eq.s32.totalorder %s37, 1
      %p364 = por %p362, %p363
      %p366 = scmp.ne.s32.totalorder %s349, %s365
      %p367 = scmp.eq.s32.totalorder %s37, 0
      %p368 = por %p366, %p367
      %p369 = scmp.le.s32.totalorder 1, %s31
      %p370 = scmp.lt.s32.totalorder %s31, 3
      %p371 = pnand %p369, %p370
      %p372 = pneg %p371
      // Predicated region
      $region9: #{ae_forward.1} parent=5 // pred_check
        _
      $region10: #{ae_forward.1} parent=5 // pred_check_branch
        %374 = sbr.rel (%p371) target = $region12
      $region11: #{ae_forward.1} parent=5 // pred_region
        %s375 = ssub.s32 %s31, 1
        // Predicated region
        $region13: #{ae_forward.1} parent=11 // pred_check
          %p376 = pneg %p78
        $region14: #{ae_forward.1} parent=11 // pred_check_branch
          %378 = sbr.rel (%p376) target = $region16
        $region15: #{ae_forward.1} parent=11 // pred_region
          _
        $region16: #{ae_forward.1} parent=11 // pred_fallthru
          _
        // Predicated region
        $region17: #{ae_forward.1} parent=11 // pred_check
          %p379 = pneg %p99
        $region18: #{ae_forward.1} parent=11 // pred_check_branch
          %381 = sbr.rel (%p379) target = $region20
        $region19: #{ae_forward.1} parent=11 // pred_region
          _
        $region20: #{ae_forward.1} parent=11 // pred_fallthru
          _
        // Predicated region
        $region21: #{ae_forward.1} parent=11 // pred_check
          %p382 = pneg %p120
        $region22: #{ae_forward.1} parent=11 // pred_check_branch
          %384 = sbr.rel (%p382) target = $region24
        $region23: #{ae_forward.1} parent=11 // pred_region
          _
        $region24: #{ae_forward.1} parent=11 // pred_fallthru
          _
        // Predicated region
        $region25: #{ae_forward.1} parent=11 // pred_check
          %p385 = pneg %p141
        $region26: #{ae_forward.1} parent=11 // pred_check_branch
          %387 = sbr.rel (%p385) target = $region28
        $region27: #{ae_forward.1} parent=11 // pred_region
          %s389 = ssub.s32 16, 16
          %390 = vsyncadd [#allocation6], %s389
          %s392 = sshll.u32 [#allocation5], 4
          %s393 = int_to_ptr.vmem [resolvable:$true] %s392
          %395 = dma.hbm_to_vmem [thread:$0]  %s4, 16, %s393, [#allocation6]
        $region28: #{ae_forward.1} parent=11 // pred_fallthru
          _
        // Predicated region
        $region29: #{ae_forward.1} parent=11 // pred_check
          %p396 = pneg %p162
        $region30: #{ae_forward.1} parent=11 // pred_check_branch
          %398 = sbr.rel (%p396) target = $region32
        $region31: #{ae_forward.1} parent=11 // pred_region
          _
        $region32: #{ae_forward.1} parent=11 // pred_fallthru
          _
        // Predicated region
        $region33: #{ae_forward.1} parent=11 // pred_check
          %p399 = pneg %p183
        $region34: #{ae_forward.1} parent=11 // pred_check_branch
          %401 = sbr.rel (%p399) target = $region36
        $region35: #{ae_forward.1} parent=11 // pred_region
          _
        $region36: #{ae_forward.1} parent=11 // pred_fallthru
          _
        // Predicated region
        $region37: #{ae_forward.1} parent=11 // pred_check
          %p402 = pneg %p204
        $region38: #{ae_forward.1} parent=11 // pred_check_branch
          %404 = sbr.rel (%p402) target = $region40
        $region39: #{ae_forward.1} parent=11 // pred_region
          _
        $region40: #{ae_forward.1} parent=11 // pred_fallthru
          _
        // Predicated region
        $region41: #{ae_forward.1} parent=11 // pred_check
          %p405 = pneg %p225
        $region42: #{ae_forward.1} parent=11 // pred_check_branch
          %407 = sbr.rel (%p405) target = $region44
        $region43: #{ae_forward.1} parent=11 // pred_region
          %s409 = ssub.s32 16, 16
          %410 = vsyncadd [#allocation6], %s409
          %s412 = sshll.u32 [#allocation7], 4
          %s413 = int_to_ptr.vmem [resolvable:$true] %s412
          %415 = dma.hbm_to_vmem [thread:$0]  %s8, 16, %s413, [#allocation6]
        $region44: #{ae_forward.1} parent=11 // pred_fallthru
          _
        // Predicated region
        $region45: #{ae_forward.1} parent=11 // pred_check
          %p416 = pneg %p246
        $region46: #{ae_forward.1} parent=11 // pred_check_branch
          %418 = sbr.rel (%p416) target = $region48
        $region47: #{ae_forward.1} parent=11 // pred_region
          _
        $region48: #{ae_forward.1} parent=11 // pred_fallthru
          _
        // Predicated region
        $region49: #{ae_forward.1} parent=11 // pred_check
          %p419 = pneg %p267
        $region50: #{ae_forward.1} parent=11 // pred_check_branch
          %421 = sbr.rel (%p419) target = $region52
        $region51: #{ae_forward.1} parent=11 // pred_region
          _
        $region52: #{ae_forward.1} parent=11 // pred_fallthru
          _
        // Predicated region
        $region53: #{ae_forward.1} parent=11 // pred_check
          %p422 = pneg %p288
        $region54: #{ae_forward.1} parent=11 // pred_check_branch
          %424 = sbr.rel (%p422) target = $region56
        $region55: #{ae_forward.1} parent=11 // pred_region
          _
        $region56: #{ae_forward.1} parent=11 // pred_fallthru
          _
        // Predicated region
        $region57: #{ae_forward.1} parent=11 // pred_check
          %p425 = pneg %p309
        $region58: #{ae_forward.1} parent=11 // pred_check_branch
          %427 = sbr.rel (%p425) target = $region60
        $region59: #{ae_forward.1} parent=11 // pred_region
          _
        $region60: #{ae_forward.1} parent=11 // pred_fallthru
          _
      $region12: #{ae_forward.1} parent=5 // pred_fallthru
        _
      %p428 = scmp.lt.s32.totalorder %s31, 2
      // Predicated region
      $region61: #{ae_forward.1} parent=5 // pred_check
        %p429 = pneg %p428
      $region62: #{ae_forward.1} parent=5 // pred_check_branch
        %431 = sbr.rel (%p429) target = $region64
      $region63: #{ae_forward.1} parent=5 // pred_region
        // Predicated region
        $region65: #{ae_forward.1} parent=63 // pred_check
          %p432 = pneg %p51
        $region66: #{ae_forward.1} parent=63 // pred_check_branch
          %434 = sbr.rel (%p432) target = $region68
        $region67: #{ae_forward.1} parent=63 // pred_region
          %s435 = sand.u32 %s41, 1
          %s436 = scalar_lea.sflag [#allocation3], %s435
          %s437 = sand.u32 %s41, 1
          %s438 = smul.addr %s437, 16
          %s439 = scalar_lea.vmem [#allocation2], %s438
          %s441 = ssub.s32 256, 256
          %442 = vsyncadd %s436, %s441
          %s443 = smul.addr %s31, 2
          %s444 = smul.addr %s443, 128
          %s445 = scalar_lea.hbm %s0, %s444
          %s447 = sshll.u32 %s439, 4
          %s448 = int_to_ptr.vmem [resolvable:$true] %s447
          %450 = dma.hbm_to_vmem [thread:$0]  %s445, 256, %s448, %s436
        $region68: #{ae_forward.1} parent=63 // pred_fallthru
          _
      $region64: #{ae_forward.1} parent=5 // pred_fallthru
        _
      %p451 = scmp.le.s32.totalorder 1, %s31
      %p452 = scmp.lt.s32.totalorder %s31, 3
      %p453 = pnand %p451, %p452
      %p454 = pneg %p453
      // Predicated region
      $region69: #{ae_forward.1} parent=5 // pred_check
        _
      $region70: #{ae_forward.1} parent=5 // pred_check_branch
        %456 = sbr.rel (%p453) target = $region72
      $region71: #{ae_forward.1} parent=5 // pred_region
        %s457 = ssub.s32 %s31, 1
        %s458 = sand.u32 %s44, 1
        %s459 = scalar_lea.sflag [#allocation3], %s458
        %s460 = sand.u32 %s44, 1
        %s461 = smul.addr %s460, 16
        %s462 = scalar_lea.vmem [#allocation2], %s461
        // Predicated region
        $region73: #{ae_forward.1} parent=71 // pred_check
          %p463 = pneg %p57
        $region74: #{ae_forward.1} parent=71 // pred_check_branch
          %465 = sbr.rel (%p463) target = $region76
        $region75: #{ae_forward.1} parent=71 // pred_region
          %466 = dma.done %s459, 256
        $region76: #{ae_forward.1} parent=71 // pred_fallthru
          _
        // Predicated region
        $region77: #{ae_forward.1} parent=71 // pred_check
          %p467 = pneg %p141
        $region78: #{ae_forward.1} parent=71 // pred_check_branch
          %469 = sbr.rel (%p467) target = $region80
        $region79: #{ae_forward.1} parent=71 // pred_region
          %470 = dma.done [#allocation6], 16
        $region80: #{ae_forward.1} parent=71 // pred_fallthru
          _
        // Predicated region
        $region81: #{ae_forward.1} parent=71 // pred_check
          %p471 = pneg %p225
        $region82: #{ae_forward.1} parent=71 // pred_check_branch
          %473 = sbr.rel (%p471) target = $region84
        $region83: #{ae_forward.1} parent=71 // pred_region
          %474 = dma.done [#allocation6], 16
        $region84: #{ae_forward.1} parent=71 // pred_fallthru
          _
        %s475 = sand.u32 %s44, 1
        %s476 = scalar_lea.sflag [#allocation3], %s475
        %s477 = sand.u32 %s44, 1
        %s478 = smul.addr %s477, 16
        %s479 = scalar_lea.vmem [#allocation2], %s478
        %p480 = pneg %p57
        %p481 = pneg %p54
        %p482 = pneg %p78
        %p483 = pneg %p75
        %p484 = pneg %p99
        %p485 = pneg %p96
        %p486 = pneg %p120
        %p487 = pneg %p117
        %p488 = pneg %p141
        %p489 = pneg %p138
        %p490 = pneg %p162
        %p491 = pneg %p159
        %p492 = pneg %p183
        %p493 = pneg %p180
        %p494 = pneg %p204
        %p495 = pneg %p201
        %p496 = pneg %p225
        %p497 = pneg %p222
        %p498 = pneg %p246
        %p499 = pneg %p243
        %p500 = pneg %p267
        %p501 = pneg %p264
        %p502 = pneg %p288
        %p503 = pneg %p285
        %p504 = pneg %p309
        %p505 = pneg %p306
        %p506 = pneg %p335
        %p507 = pneg %p332
        %s508 = sand.u32 %s322, 1
        %s509 = scalar_lea.sflag [#allocation4], %s508
        %s510 = sand.u32 %s322, 1
        %s511 = smul.addr %s510, 16
        %s512 = scalar_lea.vmem [#allocation8], %s511
        %p513 = pneg %p361
        %p514 = pneg %p358
        %s515 = sand.u32 %s348, 1
        %s516 = scalar_lea.sflag [#allocation10], %s515
        %s517 = sand.u32 %s348, 1
        %s518 = smul.addr %s517, 8
        %s519 = scalar_lea.vmem [#allocation9], %s518
        %v520 = vld [vmem:[%s462] sm:$0xff]
        %v521 = vld [vmem:[%s462 + $0x8] sm:$0xff]
        %v522 = vld [vmem:[%s1] sm:$0xff]
        %v523 = vld [vmem:[%s1 + $0x8] sm:$0xff]
        %v524 = vld [vmem:[%s1 + $0x10] sm:$0xff]
        %v525 = vld [vmem:[%s1 + $0x18] sm:$0xff]
        %v526 = vld [vmem:[%s1 + $0x20] sm:$0xff]
        %v527 = vld [vmem:[%s1 + $0x28] sm:$0xff]
        %v528 = vld [vmem:[%s1 + $0x30] sm:$0xff]
        %v529 = vld [vmem:[%s1 + $0x38] sm:$0xff]
        %v530 = vld [vmem:[%s1 + $0x40] sm:$0xff]
        %v531 = vld [vmem:[%s1 + $0x48] sm:$0xff]
        %v532 = vld [vmem:[%s1 + $0x50] sm:$0xff]
        %v533 = vld [vmem:[%s1 + $0x58] sm:$0xff]
        %v534 = vld [vmem:[%s1 + $0x60] sm:$0xff]
        %v535 = vld [vmem:[%s1 + $0x68] sm:$0xff]
        %v536 = vld [vmem:[%s1 + $0x70] sm:$0xff]
        %v537 = vld [vmem:[%s1 + $0x78] sm:$0xff]
        %v538 = vld [vmem:[%s1 + $0x80] sm:$0xff]
        %v539 = vld [vmem:[%s1 + $0x88] sm:$0xff]
        %v540 = vld [vmem:[%s1 + $0x90] sm:$0xff]
        %v541 = vld [vmem:[%s1 + $0x98] sm:$0xff]
        %v542 = vld [vmem:[%s1 + $0xa0] sm:$0xff]
        %v543 = vld [vmem:[%s1 + $0xa8] sm:$0xff]
        %v544 = vld [vmem:[%s1 + $0xb0] sm:$0xff]
        %v545 = vld [vmem:[%s1 + $0xb8] sm:$0xff]
        %v546 = vld [vmem:[%s1 + $0xc0] sm:$0xff]
        %v547 = vld [vmem:[%s1 + $0xc8] sm:$0xff]
        %v548 = vld [vmem:[%s1 + $0xd0] sm:$0xff]
        %v549 = vld [vmem:[%s1 + $0xd8] sm:$0xff]
        %v550 = vld [vmem:[%s1 + $0xe0] sm:$0xff]
        %v551 = vld [vmem:[%s1 + $0xe8] sm:$0xff]
        %v552 = vld [vmem:[%s1 + $0xf0] sm:$0xff]
        %v553 = vld [vmem:[%s1 + $0xf8] sm:$0xff]
        %v554 = vld [vmem:[%s2] sm:$0x1]
        %v556 = vlaneseq
        %v557 = vshrl.u32 %v556, 7
        %v558 = vsub.s32 0, %v557
        %v559 = vrot.slane %v554, %v558
        %561 = vmatprep.subr.mxu0 0.0
        %562 = vmatpush1.msra.mxu0 %v522
        %563 = vmatprep.subr.mxu0 0.0
        %564 = vmatpush1.msra.mxu0 %v523
        %565 = vmatprep.subr.mxu0 0.0
        %566 = vmatpush1.msra.mxu0 %v524
        %567 = vmatprep.subr.mxu0 0.0
        %568 = vmatpush1.msra.mxu0 %v525
        %569 = vmatprep.subr.mxu0 0.0
        %570 = vmatpush1.msra.mxu0 %v526
        %571 = vmatprep.subr.mxu0 0.0
        %572 = vmatpush1.msra.mxu0 %v527
        %573 = vmatprep.subr.mxu0 0.0
        %574 = vmatpush1.msra.mxu0 %v528
        %575 = vmatprep.subr.mxu0 0.0
        %576 = vmatpush1.msra.mxu0 %v529
        %577 = vmatprep.subr.mxu0 0.0
        %578 = vmatpush1.msra.mxu0 %v530
        %579 = vmatprep.subr.mxu0 0.0
        %580 = vmatpush1.msra.mxu0 %v531
        %581 = vmatprep.subr.mxu0 0.0
        %582 = vmatpush1.msra.mxu0 %v532
        %583 = vmatprep.subr.mxu0 0.0
        %584 = vmatpush1.msra.mxu0 %v533
        %585 = vmatprep.subr.mxu0 0.0
        %586 = vmatpush1.msra.mxu0 %v534
        %587 = vmatprep.subr.mxu0 0.0
        %588 = vmatpush1.msra.mxu0 %v535
        %589 = vmatprep.subr.mxu0 0.0
        %590 = vmatpush1.msra.mxu0 %v536
        %591 = vmatprep.subr.mxu0 0.0
        %592 = vmatpush1.msra.mxu0 %v537
        %593 = vmatprep.subr.mxu0 0.0
        %594 = vmatpush1.msra.mxu0 %v538
        %595 = vmatprep.subr.mxu0 0.0
        %596 = vmatpush1.msra.mxu0 %v539
        %597 = vmatprep.subr.mxu0 0.0
        %598 = vmatpush1.msra.mxu0 %v540
        %599 = vmatprep.subr.mxu0 0.0
        %600 = vmatpush1.msra.mxu0 %v541
        %601 = vmatprep.subr.mxu0 0.0
        %602 = vmatpush1.msra.mxu0 %v542
        %603 = vmatprep.subr.mxu0 0.0
        %604 = vmatpush1.msra.mxu0 %v543
        %605 = vmatprep.subr.mxu0 0.0
        %606 = vmatpush1.msra.mxu0 %v544
        %607 = vmatprep.subr.mxu0 0.0
        %608 = vmatpush1.msra.mxu0 %v545
        %609 = vmatprep.subr.mxu0 0.0
        %610 = vmatpush1.msra.mxu0 %v546
        %611 = vmatprep.subr.mxu0 0.0
        %612 = vmatpush1.msra.mxu0 %v547
        %613 = vmatprep.subr.mxu0 0.0
        %614 = vmatpush1.msra.mxu0 %v548
        %615 = vmatprep.subr.mxu0 0.0
        %616 = vmatpush1.msra.mxu0 %v549
        %617 = vmatprep.subr.mxu0 0.0
        %618 = vmatpush1.msra.mxu0 %v550
        %619 = vmatprep.subr.mxu0 0.0
        %620 = vmatpush1.msra.mxu0 %v551
        %621 = vmatprep.subr.mxu0 0.0
        %622 = vmatpush1.msra.mxu0 %v552
        %623 = vmatprep.subr.mxu0 0.0
        %624 = vmatpush1.msra.mxu0 %v553
        %625 = vmatprep.mubr.f32.mxu0 %v521
        %626 = vmatmul.mubr.f32.gmra.mrb[0].mxu0 %v520
        %v627 = vpop.f32.mrb[0].mxu0
        %v628 = vadd.f32 %v559, %v627
        %v629 = vpop.f32.mrb[0].mxu0
        %630 = vdwg.mxu0
        %v631 = vmax.f32 %v628, 0.0
        %v632 = vld [vmem:[%s3] sm:$0xff]
        %v633 = vld [vmem:[%s3 + $0x8] sm:$0xff]
        %v634 = vld [vmem:[%s3 + $0x10] sm:$0xff]
        %v635 = vld [vmem:[%s3 + $0x18] sm:$0xff]
        %v636 = vld [vmem:[%s3 + $0x20] sm:$0xff]
        %v637 = vld [vmem:[%s3 + $0x28] sm:$0xff]
        %v638 = vld [vmem:[%s3 + $0x30] sm:$0xff]
        %v639 = vld [vmem:[%s3 + $0x38] sm:$0xff]
        %v640 = vld [vmem:[%s3 + $0x40] sm:$0xff]
        %v641 = vld [vmem:[%s3 + $0x48] sm:$0xff]
        %v642 = vld [vmem:[%s3 + $0x50] sm:$0xff]
        %v643 = vld [vmem:[%s3 + $0x58] sm:$0xff]
        %v644 = vld [vmem:[%s3 + $0x60] sm:$0xff]
        %v645 = vld [vmem:[%s3 + $0x68] sm:$0xff]
        %v646 = vld [vmem:[%s3 + $0x70] sm:$0xff]
        %v647 = vld [vmem:[%s3 + $0x78] sm:$0xff]
        %v648 = vld [vmem:[#allocation5] sm:$0x1]
        %v650 = vlaneseq
        %v651 = vshrl.u32 %v650, 7
        %v652 = vsub.s32 0, %v651
        %v653 = vrot.slane %v648, %v652
        %655 = vmatprep.subr.mxu0 0.0
        %656 = vmatpush1.msra.mxu0 %v632
        %657 = vmatprep.subr.mxu0 0.0
        %658 = vmatpush1.msra.mxu0 %v633
        %659 = vmatprep.subr.mxu0 0.0
        %660 = vmatpush1.msra.mxu0 %v634
        %661 = vmatprep.subr.mxu0 0.0
        %662 = vmatpush1.msra.mxu0 %v635
        %663 = vmatprep.subr.mxu0 0.0
        %664 = vmatpush1.msra.mxu0 %v636
        %665 = vmatprep.subr.mxu0 0.0
        %666 = vmatpush1.msra.mxu0 %v637
        %667 = vmatprep.subr.mxu0 0.0
        %668 = vmatpush1.msra.mxu0 %v638
        %669 = vmatprep.subr.mxu0 0.0
        %670 = vmatpush1.msra.mxu0 %v639
        %671 = vmatprep.subr.mxu0 0.0
        %672 = vmatpush1.msra.mxu0 %v640
        %673 = vmatprep.subr.mxu0 0.0
        %674 = vmatpush1.msra.mxu0 %v641
        %675 = vmatprep.subr.mxu0 0.0
        %676 = vmatpush1.msra.mxu0 %v642
        %677 = vmatprep.subr.mxu0 0.0
        %678 = vmatpush1.msra.mxu0 %v643
        %679 = vmatprep.subr.mxu0 0.0
        %680 = vmatpush1.msra.mxu0 %v644
        %681 = vmatprep.subr.mxu0 0.0
        %682 = vmatpush1.msra.mxu0 %v645
        %683 = vmatprep.subr.mxu0 0.0
        %684 = vmatpush1.msra.mxu0 %v646
        %685 = vmatprep.subr.mxu0 0.0
        %686 = vmatpush1.msra.mxu0 %v647
        %687 = vmatprep.subr.mxu0 0.0
        %688 = vmatpush1.msra.mxu0 0.0
        %689 = vmatprep.subr.mxu0 0.0
        %690 = vmatpush1.msra.mxu0 0.0
        %691 = vmatprep.subr.mxu0 0.0
        %692 = vmatpush1.msra.mxu0 0.0
        %693 = vmatprep.subr.mxu0 0.0
        %694 = vmatpush1.msra.mxu0 0.0
        %695 = vmatprep.subr.mxu0 0.0
        %696 = vmatpush1.msra.mxu0 0.0
        %697 = vmatprep.subr.mxu0 0.0
        %698 = vmatpush1.msra.mxu0 0.0
        %699 = vmatprep.subr.mxu0 0.0
        %700 = vmatpush1.msra.mxu0 0.0
        %701 = vmatprep.subr.mxu0 0.0
        %702 = vmatpush1.msra.mxu0 0.0
        %703 = vmatprep.subr.mxu0 0.0
        %704 = vmatpush1.msra.mxu0 0.0
        %705 = vmatprep.subr.mxu0 0.0
        %706 = vmatpush1.msra.mxu0 0.0
        %707 = vmatprep.subr.mxu0 0.0
        %708 = vmatpush1.msra.mxu0 0.0
        %709 = vmatprep.subr.mxu0 0.0
        %710 = vmatpush1.msra.mxu0 0.0
        %711 = vmatprep.subr.mxu0 0.0
        %712 = vmatpush1.msra.mxu0 0.0
        %713 = vmatprep.subr.mxu0 0.0
        %714 = vmatpush1.msra.mxu0 0.0
        %715 = vmatprep.subr.mxu0 0.0
        %716 = vmatpush1.msra.mxu0 0.0
        %717 = vmatprep.subr.mxu0 0.0
        %718 = vmatpush1.msra.mxu0 0.0
        %719 = vmatprep.mubr.f32.mxu0 0.0
        %720 = vmatmul.mubr.f32.gmra.mrb[0].mxu0 %v631
        %v721 = vpop.f32.mrb[0].mxu0
        %v722 = vadd.f32 %v653, %v721
        %v723 = vpop.f32.mrb[0].mxu0
        %724 = vdwg.mxu0
        %v725 = vmax.f32 %v722, 0.0
        %v726 = vld [vmem:[%s5] sm:$0xff]
        %v727 = vld [vmem:[%s5 + $0x8] sm:$0xff]
        %v728 = vld [vmem:[%s5 + $0x10] sm:$0xff]
        %v729 = vld [vmem:[%s5 + $0x18] sm:$0xff]
        %v730 = vld [vmem:[%s5 + $0x20] sm:$0xff]
        %v731 = vld [vmem:[%s5 + $0x28] sm:$0xff]
        %v732 = vld [vmem:[%s5 + $0x30] sm:$0xff]
        %v733 = vld [vmem:[%s5 + $0x38] sm:$0xff]
        %v734 = vld [vmem:[%s6] sm:$0x1]
        %v736 = vlaneseq
        %v737 = vshrl.u32 %v736, 7
        %v738 = vsub.s32 0, %v737
        %v739 = vrot.slane %v734, %v738
        %vm741 = vcmask 523264
        %v743 = vsel %vm741, %v725, 0
        %745 = vmatprep.subr.mxu0 0.0
        %746 = vmatpush1.msra.mxu0 %v726
        %747 = vmatprep.subr.mxu0 0.0
        %748 = vmatpush1.msra.mxu0 %v727
        %749 = vmatprep.subr.mxu0 0.0
        %750 = vmatpush1.msra.mxu0 %v728
        %751 = vmatprep.subr.mxu0 0.0
        %752 = vmatpush1.msra.mxu0 %v729
        %753 = vmatprep.subr.mxu0 0.0
        %754 = vmatpush1.msra.mxu0 %v730
        %755 = vmatprep.subr.mxu0 0.0
        %756 = vmatpush1.msra.mxu0 %v731
        %757 = vmatprep.subr.mxu0 0.0
        %758 = vmatpush1.msra.mxu0 %v732
        %759 = vmatprep.subr.mxu0 0.0
        %760 = vmatpush1.msra.mxu0 %v733
        %761 = vmatprep.subr.mxu0 0.0
        %762 = vmatpush1.msra.mxu0 0.0
        %763 = vmatprep.subr.mxu0 0.0
        %764 = vmatpush1.msra.mxu0 0.0
        %765 = vmatprep.subr.mxu0 0.0
        %766 = vmatpush1.msra.mxu0 0.0
        %767 = vmatprep.subr.mxu0 0.0
        %768 = vmatpush1.msra.mxu0 0.0
        %769 = vmatprep.subr.mxu0 0.0
        %770 = vmatpush1.msra.mxu0 0.0
        %771 = vmatprep.subr.mxu0 0.0
        %772 = vmatpush1.msra.mxu0 0.0
        %773 = vmatprep.subr.mxu0 0.0
        %774 = vmatpush1.msra.mxu0 0.0
        %775 = vmatprep.subr.mxu0 0.0
        %776 = vmatpush1.msra.mxu0 0.0
        %777 = vmatprep.subr.mxu0 0.0
        %778 = vmatpush1.msra.mxu0 0.0
        %779 = vmatprep.subr.mxu0 0.0
        %780 = vmatpush1.msra.mxu0 0.0
        %781 = vmatprep.subr.mxu0 0.0
        %782 = vmatpush1.msra.mxu0 0.0
        %783 = vmatprep.subr.mxu0 0.0
        %784 = vmatpush1.msra.mxu0 0.0
        %785 = vmatprep.subr.mxu0 0.0
        %786 = vmatpush1.msra.mxu0 0.0
        %787 = vmatprep.subr.mxu0 0.0
        %788 = vmatpush1.msra.mxu0 0.0
        %789 = vmatprep.subr.mxu0 0.0
        %790 = vmatpush1.msra.mxu0 0.0
        %791 = vmatprep.subr.mxu0 0.0
        %792 = vmatpush1.msra.mxu0 0.0
        %793 = vmatprep.subr.mxu0 0.0
        %794 = vmatpush1.msra.mxu0 0.0
        %795 = vmatprep.subr.mxu0 0.0
        %796 = vmatpush1.msra.mxu0 0.0
        %797 = vmatprep.subr.mxu0 0.0
        %798 = vmatpush1.msra.mxu0 0.0
        %799 = vmatprep.subr.mxu0 0.0
        %800 = vmatpush1.msra.mxu0 0.0
        %801 = vmatprep.subr.mxu0 0.0
        %802 = vmatpush1.msra.mxu0 0.0
        %803 = vmatprep.subr.mxu0 0.0
        %804 = vmatpush1.msra.mxu0 0.0
        %805 = vmatprep.subr.mxu0 0.0
        %806 = vmatpush1.msra.mxu0 0.0
        %807 = vmatprep.subr.mxu0 0.0
        %808 = vmatpush1.msra.mxu0 0.0
        %809 = vmatprep.mubr.f32.mxu0 0.0
        %810 = vmatmul.mubr.f32.gmra.mrb[0].mxu0 %v743
        %v811 = vpop.f32.mrb[0].mxu0
        %v812 = vadd.f32 %v739, %v811
        %v813 = vpop.f32.mrb[0].mxu0
        %814 = vdwg.mxu0
        %v815 = vld [vmem:[%s7] sm:$0xff]
        %v816 = vld [vmem:[%s7 + $0x8] sm:$0xff]
        %v817 = vld [vmem:[%s7 + $0x10] sm:$0xff]
        %v818 = vld [vmem:[%s7 + $0x18] sm:$0xff]
        %v819 = vld [vmem:[%s7 + $0x20] sm:$0xff]
        %v820 = vld [vmem:[%s7 + $0x28] sm:$0xff]
        %v821 = vld [vmem:[%s7 + $0x30] sm:$0xff]
        %v822 = vld [vmem:[%s7 + $0x38] sm:$0xff]
        %v823 = vld [vmem:[%s7 + $0x40] sm:$0xff]
        %v824 = vld [vmem:[%s7 + $0x48] sm:$0xff]
        %v825 = vld [vmem:[%s7 + $0x50] sm:$0xff]
        %v826 = vld [vmem:[%s7 + $0x58] sm:$0xff]
        %v827 = vld [vmem:[%s7 + $0x60] sm:$0xff]
        %v828 = vld [vmem:[%s7 + $0x68] sm:$0xff]
        %v829 = vld [vmem:[%s7 + $0x70] sm:$0xff]
        %v830 = vld [vmem:[%s7 + $0x78] sm:$0xff]
        %v831 = vld [vmem:[#allocation7] sm:$0x1]
        %v833 = vlaneseq
        %v834 = vshrl.u32 %v833, 7
        %v835 = vsub.s32 0, %v834
        %v836 = vrot.slane %v831, %v835
        %838 = vmatprep.subr.mxu0 0.0
        %839 = vmatpush1.msra.mxu0 %v815
        %840 = vmatprep.subr.mxu0 0.0
        %841 = vmatpush1.msra.mxu0 %v816
        %842 = vmatprep.subr.mxu0 0.0
        %843 = vmatpush1.msra.mxu0 %v817
        %844 = vmatprep.subr.mxu0 0.0
        %845 = vmatpush1.msra.mxu0 %v818
        %846 = vmatprep.subr.mxu0 0.0
        %847 = vmatpush1.msra.mxu0 %v819
        %848 = vmatprep.subr.mxu0 0.0
        %849 = vmatpush1.msra.mxu0 %v820
        %850 = vmatprep.subr.mxu0 0.0
        %851 = vmatpush1.msra.mxu0 %v821
        %852 = vmatprep.subr.mxu0 0.0
        %853 = vmatpush1.msra.mxu0 %v822
        %854 = vmatprep.subr.mxu0 0.0
        %855 = vmatpush1.msra.mxu0 %v823
        %856 = vmatprep.subr.mxu0 0.0
        %857 = vmatpush1.msra.mxu0 %v824
        %858 = vmatprep.subr.mxu0 0.0
        %859 = vmatpush1.msra.mxu0 %v825
        %860 = vmatprep.subr.mxu0 0.0
        %861 = vmatpush1.msra.mxu0 %v826
        %862 = vmatprep.subr.mxu0 0.0
        %863 = vmatpush1.msra.mxu0 %v827
        %864 = vmatprep.subr.mxu0 0.0
        %865 = vmatpush1.msra.mxu0 %v828
        %866 = vmatprep.subr.mxu0 0.0
        %867 = vmatpush1.msra.mxu0 %v829
        %868 = vmatprep.subr.mxu0 0.0
        %869 = vmatpush1.msra.mxu0 %v830
        %870 = vmatprep.subr.mxu0 0.0
        %871 = vmatpush1.msra.mxu0 0.0
        %872 = vmatprep.subr.mxu0 0.0
        %873 = vmatpush1.msra.mxu0 0.0
        %874 = vmatprep.subr.mxu0 0.0
        %875 = vmatpush1.msra.mxu0 0.0
        %876 = vmatprep.subr.mxu0 0.0
        %877 = vmatpush1.msra.mxu0 0.0
        %878 = vmatprep.subr.mxu0 0.0
        %879 = vmatpush1.msra.mxu0 0.0
        %880 = vmatprep.subr.mxu0 0.0
        %881 = vmatpush1.msra.mxu0 0.0
        %882 = vmatprep.subr.mxu0 0.0
        %883 = vmatpush1.msra.mxu0 0.0
        %884 = vmatprep.subr.mxu0 0.0
        %885 = vmatpush1.msra.mxu0 0.0
        %886 = vmatprep.subr.mxu0 0.0
        %887 = vmatpush1.msra.mxu0 0.0
        %888 = vmatprep.subr.mxu0 0.0
        %889 = vmatpush1.msra.mxu0 0.0
        %890 = vmatprep.subr.mxu0 0.0
        %891 = vmatpush1.msra.mxu0 0.0
        %892 = vmatprep.subr.mxu0 0.0
        %893 = vmatpush1.msra.mxu0 0.0
        %894 = vmatprep.subr.mxu0 0.0
        %895 = vmatpush1.msra.mxu0 0.0
        %896 = vmatprep.subr.mxu0 0.0
        %897 = vmatpush1.msra.mxu0 0.0
        %898 = vmatprep.subr.mxu0 0.0
        %899 = vmatpush1.msra.mxu0 0.0
        %900 = vmatprep.subr.mxu0 0.0
        %901 = vmatpush1.msra.mxu0 0.0
        %902 = vmatprep.mubr.f32.mxu0 0.0
        %903 = vmatmul.mubr.f32.gmra.mrb[0].mxu0 %v812
        %v904 = vpop.f32.mrb[0].mxu0
        %v905 = vadd.f32 %v836, %v904
        %v906 = vpop.f32.mrb[0].mxu0
        %907 = vdwg.mxu0
        %v908 = vmax.f32 %v905, 0.0
        %v909 = vld [vmem:[%s9] sm:$0xff]
        %v910 = vld [vmem:[%s9 + $0x8] sm:$0xff]
        %v911 = vld [vmem:[%s9 + $0x10] sm:$0xff]
        %v912 = vld [vmem:[%s9 + $0x18] sm:$0xff]
        %v913 = vld [vmem:[%s9 + $0x20] sm:$0xff]
        %v914 = vld [vmem:[%s9 + $0x28] sm:$0xff]
        %v915 = vld [vmem:[%s9 + $0x30] sm:$0xff]
        %v916 = vld [vmem:[%s9 + $0x38] sm:$0xff]
        %v917 = vld [vmem:[%s10] sm:$0x1]
        %v919 = vlaneseq
        %v920 = vshrl.u32 %v919, 7
        %v921 = vsub.s32 0, %v920
        %v922 = vrot.slane %v917, %v921
        %v925 = vsel %vm741, %v908, 0
        %927 = vmatprep.subr.mxu0 0.0
        %928 = vmatpush1.msra.mxu0 %v909
        %929 = vmatprep.subr.mxu0 0.0
        %930 = vmatpush1.msra.mxu0 %v910
        %931 = vmatprep.subr.mxu0 0.0
        %932 = vmatpush1.msra.mxu0 %v911
        %933 = vmatprep.subr.mxu0 0.0
        %934 = vmatpush1.msra.mxu0 %v912
        %935 = vmatprep.subr.mxu0 0.0
        %936 = vmatpush1.msra.mxu0 %v913
        %937 = vmatprep.subr.mxu0 0.0
        %938 = vmatpush1.msra.mxu0 %v914
        %939 = vmatprep.subr.mxu0 0.0
        %940 = vmatpush1.msra.mxu0 %v915
        %941 = vmatprep.subr.mxu0 0.0
        %942 = vmatpush1.msra.mxu0 %v916
        %943 = vmatprep.subr.mxu0 0.0
        %944 = vmatpush1.msra.mxu0 0.0
        %945 = vmatprep.subr.mxu0 0.0
        %946 = vmatpush1.msra.mxu0 0.0
        %947 = vmatprep.subr.mxu0 0.0
        %948 = vmatpush1.msra.mxu0 0.0
        %949 = vmatprep.subr.mxu0 0.0
        %950 = vmatpush1.msra.mxu0 0.0
        %951 = vmatprep.subr.mxu0 0.0
        %952 = vmatpush1.msra.mxu0 0.0
        %953 = vmatprep.subr.mxu0 0.0
        %954 = vmatpush1.msra.mxu0 0.0
        %955 = vmatprep.subr.mxu0 0.0
        %956 = vmatpush1.msra.mxu0 0.0
        %957 = vmatprep.subr.mxu0 0.0
        %958 = vmatpush1.msra.mxu0 0.0
        %959 = vmatprep.subr.mxu0 0.0
        %960 = vmatpush1.msra.mxu0 0.0
        %961 = vmatprep.subr.mxu0 0.0
        %962 = vmatpush1.msra.mxu0 0.0
        %963 = vmatprep.subr.mxu0 0.0
        %964 = vmatpush1.msra.mxu0 0.0
        %965 = vmatprep.subr.mxu0 0.0
        %966 = vmatpush1.msra.mxu0 0.0
        %967 = vmatprep.subr.mxu0 0.0
        %968 = vmatpush1.msra.mxu0 0.0
        %969 = vmatprep.subr.mxu0 0.0
        %970 = vmatpush1.msra.mxu0 0.0
        %971 = vmatprep.subr.mxu0 0.0
        %972 = vmatpush1.msra.mxu0 0.0
        %973 = vmatprep.subr.mxu0 0.0
        %974 = vmatpush1.msra.mxu0 0.0
        %975 = vmatprep.subr.mxu0 0.0
        %976 = vmatpush1.msra.mxu0 0.0
        %977 = vmatprep.subr.mxu0 0.0
        %978 = vmatpush1.msra.mxu0 0.0
        %979 = vmatprep.subr.mxu0 0.0
        %980 = vmatpush1.msra.mxu0 0.0
        %981 = vmatprep.subr.mxu0 0.0
        %982 = vmatpush1.msra.mxu0 0.0
        %983 = vmatprep.subr.mxu0 0.0
        %984 = vmatpush1.msra.mxu0 0.0
        %985 = vmatprep.subr.mxu0 0.0
        %986 = vmatpush1.msra.mxu0 0.0
        %987 = vmatprep.subr.mxu0 0.0
        %988 = vmatpush1.msra.mxu0 0.0
        %989 = vmatprep.subr.mxu0 0.0
        %990 = vmatpush1.msra.mxu0 0.0
        %991 = vmatprep.mubr.f32.mxu0 0.0
        %992 = vmatmul.mubr.f32.gmra.mrb[0].mxu0 %v925
        %v993 = vpop.f32.mrb[0].mxu0
        %v994 = vadd.f32 %v922, %v993
        %v995 = vpop.f32.mrb[0].mxu0
        %996 = vdwg.mxu0
        %v997 = vmax.f32 %v994, 0.0
        %v998 = vld [vmem:[%s11] sm:$0xff]
        %v999 = vld [vmem:[%s11 + $0x8] sm:$0xff]
        %v1000 = vld [vmem:[%s11 + $0x10] sm:$0xff]
        %v1001 = vld [vmem:[%s11 + $0x18] sm:$0xff]
        %v1002 = vld [vmem:[%s11 + $0x20] sm:$0xff]
        %v1003 = vld [vmem:[%s11 + $0x28] sm:$0xff]
        %v1004 = vld [vmem:[%s11 + $0x30] sm:$0xff]
        %v1005 = vld [vmem:[%s11 + $0x38] sm:$0xff]
        %v1006 = vld [vmem:[%s11 + $0x40] sm:$0xff]
        %v1007 = vld [vmem:[%s11 + $0x48] sm:$0xff]
        %v1008 = vld [vmem:[%s11 + $0x50] sm:$0xff]
        %v1009 = vld [vmem:[%s11 + $0x58] sm:$0xff]
        %v1010 = vld [vmem:[%s11 + $0x60] sm:$0xff]
        %v1011 = vld [vmem:[%s11 + $0x68] sm:$0xff]
        %v1012 = vld [vmem:[%s11 + $0x70] sm:$0xff]
        %v1013 = vld [vmem:[%s11 + $0x78] sm:$0xff]
        %v1014 = vld [vmem:[%s11 + $0x80] sm:$0xff]
        %v1015 = vld [vmem:[%s11 + $0x88] sm:$0xff]
        %v1016 = vld [vmem:[%s11 + $0x90] sm:$0xff]
        %v1017 = vld [vmem:[%s11 + $0x98] sm:$0xff]
        %v1018 = vld [vmem:[%s11 + $0xa0] sm:$0xff]
        %v1019 = vld [vmem:[%s11 + $0xa8] sm:$0xff]
        %v1020 = vld [vmem:[%s11 + $0xb0] sm:$0xff]
        %v1021 = vld [vmem:[%s11 + $0xb8] sm:$0xff]
        %v1022 = vld [vmem:[%s11 + $0xc0] sm:$0xff]
        %v1023 = vld [vmem:[%s11 + $0xc8] sm:$0xff]
        %v1024 = vld [vmem:[%s11 + $0xd0] sm:$0xff]
        %v1025 = vld [vmem:[%s11 + $0xd8] sm:$0xff]
        %v1026 = vld [vmem:[%s11 + $0xe0] sm:$0xff]
        %v1027 = vld [vmem:[%s11 + $0xe8] sm:$0xff]
        %v1028 = vld [vmem:[%s11 + $0xf0] sm:$0xff]
        %v1029 = vld [vmem:[%s11 + $0xf8] sm:$0xff]
        %v1030 = vld [vmem:[%s12] sm:$0x3]
        %v1032 = vlaneseq
        %v1033 = vshrl.u32 %v1032, 7
        %v1034 = vsub.s32 0, %v1033
        %v1035 = vrot.slane %v1030, %v1034
        %v1036 = vlaneseq
        %v1037 = vshrl.u32 %v1036, 7
        %v1038 = vsub.s32 1, %v1037
        %v1039 = vrot.slane %v1030, %v1038
        %1042 = vmatprep.subr.mxu0 %v999
        %1043 = vmatpush1.msra.mxu0 %v998
        %1044 = vmatprep.subr.mxu0 %v1001
        %1045 = vmatpush1.msra.mxu0 %v1000
        %1046 = vmatprep.subr.mxu0 %v1003
        %1047 = vmatpush1.msra.mxu0 %v1002
        %1048 = vmatprep.subr.mxu0 %v1005
        %1049 = vmatpush1.msra.mxu0 %v1004
        %1050 = vmatprep.subr.mxu0 %v1007
        %1051 = vmatpush1.msra.mxu0 %v1006
        %1052 = vmatprep.subr.mxu0 %v1009
        %1053 = vmatpush1.msra.mxu0 %v1008
        %1054 = vmatprep.subr.mxu0 %v1011
        %1055 = vmatpush1.msra.mxu0 %v1010
        %1056 = vmatprep.subr.mxu0 %v1013
        %1057 = vmatpush1.msra.mxu0 %v1012
        %1058 = vmatprep.subr.mxu0 %v1015
        %1059 = vmatpush1.msra.mxu0 %v1014
        %1060 = vmatprep.subr.mxu0 %v1017
        %1061 = vmatpush1.msra.mxu0 %v1016
        %1062 = vmatprep.subr.mxu0 %v1019
        %1063 = vmatpush1.msra.mxu0 %v1018
        %1064 = vmatprep.subr.mxu0 %v1021
        %1065 = vmatpush1.msra.mxu0 %v1020
        %1066 = vmatprep.subr.mxu0 %v1023
        %1067 = vmatpush1.msra.mxu0 %v1022
        %1068 = vmatprep.subr.mxu0 %v1025
        %1069 = vmatpush1.msra.mxu0 %v1024
        %1070 = vmatprep.subr.mxu0 %v1027
        %1071 = vmatpush1.msra.mxu0 %v1026
        %1072 = vmatprep.subr.mxu0 %v1029
        %1073 = vmatpush1.msra.mxu0 %v1028
        %1074 = vmatprep.subr.mxu0 0.0
        %1075 = vmatpush1.msra.mxu0 0.0
        %1076 = vmatprep.subr.mxu0 0.0
        %1077 = vmatpush1.msra.mxu0 0.0
        %1078 = vmatprep.subr.mxu0 0.0
        %1079 = vmatpush1.msra.mxu0 0.0
        %1080 = vmatprep.subr.mxu0 0.0
        %1081 = vmatpush1.msra.mxu0 0.0
        %1082 = vmatprep.subr.mxu0 0.0
        %1083 = vmatpush1.msra.mxu0 0.0
        %1084 = vmatprep.subr.mxu0 0.0
        %1085 = vmatpush1.msra.mxu0 0.0
        %1086 = vmatprep.subr.mxu0 0.0
        %1087 = vmatpush1.msra.mxu0 0.0
        %1088 = vmatprep.subr.mxu0 0.0
        %1089 = vmatpush1.msra.mxu0 0.0
        %1090 = vmatprep.subr.mxu0 0.0
        %1091 = vmatpush1.msra.mxu0 0.0
        %1092 = vmatprep.subr.mxu0 0.0
        %1093 = vmatpush1.msra.mxu0 0.0
        %1094 = vmatprep.subr.mxu0 0.0
        %1095 = vmatpush1.msra.mxu0 0.0
        %1096 = vmatprep.subr.mxu0 0.0
        %1097 = vmatpush1.msra.mxu0 0.0
        %1098 = vmatprep.subr.mxu0 0.0
        %1099 = vmatpush1.msra.mxu0 0.0
        %1100 = vmatprep.subr.mxu0 0.0
        %1101 = vmatpush1.msra.mxu0 0.0
        %1102 = vmatprep.subr.mxu0 0.0
        %1103 = vmatpush1.msra.mxu0 0.0
        %1104 = vmatprep.subr.mxu0 0.0
        %1105 = vmatpush1.msra.mxu0 0.0
        %1106 = vmatprep.mubr.f32.mxu0 0.0
        %1107 = vmatmul.mubr.f32.gmra.mrb[0].mxu0 %v997
        %v1108 = vpop.f32.mrb[0].mxu0
        %v1109 = vadd.f32 %v1035, %v1108
        %v1110 = vpop.f32.mrb[0].mxu0
        %v1111 = vadd.f32 %v1039, %v1110
        %1112 = vdwg.mxu0
        %1113 = vst [vmem:[%s512] sm:$0xff] %v1109
        %1114 = vst [vmem:[%s512 + $0x8] sm:$0xff] %v1111
        %1115 = vst [vmem:[%s519] sm:$0xff] %v812
        %s1116 = sand.u32 %s322, 1
        %s1117 = scalar_lea.sflag [#allocation4], %s1116
        %s1118 = sand.u32 %s322, 1
        %s1119 = smul.addr %s1118, 16
        %s1120 = scalar_lea.vmem [#allocation8], %s1119
        %s1121 = sand.u32 %s348, 1
        %s1122 = scalar_lea.sflag [#allocation10], %s1121
        %s1123 = sand.u32 %s348, 1
        %s1124 = smul.addr %s1123, 8
        %s1125 = scalar_lea.vmem [#allocation9], %s1124
        // Predicated region
        $region85: #{ae_forward.1} parent=71 // pred_check
          %p1126 = pneg %p332
        $region86: #{ae_forward.1} parent=71 // pred_check_branch
          %1128 = sbr.rel (%p1126) target = $region88
        $region87: #{ae_forward.1} parent=71 // pred_region
          %s1130 = ssub.s32 256, 256
          %1131 = vsyncadd %s1117, %s1130
          %s1132 = smul.addr %s36, 2
          %s1133 = smul.addr %s1132, 128
          %s1134 = scalar_lea.hbm %s13, %s1133
          %s1136 = sshll.u32 %s1120, 4
          %s1137 = int_to_ptr.vmem [resolvable:$true] %s1136
          %1139 = dma.vmem_to_hbm [thread:$0]  %s1137, 256, %s1134, %s1117
        $region88: #{ae_forward.1} parent=71 // pred_fallthru
          _
        // Predicated region
        $region89: #{ae_forward.1} parent=71 // pred_check
          %p1140 = pneg %p358
        $region90: #{ae_forward.1} parent=71 // pred_check_branch
          %1142 = sbr.rel (%p1140) target = $region92
        $region91: #{ae_forward.1} parent=71 // pred_region
          %s1144 = ssub.s32 128, 128
          %1145 = vsyncadd %s1122, %s1144
          %s1146 = smul.addr %s36, 128
          %s1147 = scalar_lea.hbm %s14, %s1146
          %s1149 = sshll.u32 %s1125, 4
          %s1150 = int_to_ptr.vmem [resolvable:$true] %s1149
          %1152 = dma.vmem_to_hbm [thread:$0]  %s1150, 128, %s1147, %s1122
        $region92: #{ae_forward.1} parent=71 // pred_fallthru
          _
      $region72: #{ae_forward.1} parent=5 // pred_fallthru
        _
      %p1153 = scmp.le.s32.totalorder 2, %s31
      // Predicated region
      $region93: #{ae_forward.1} parent=5 // pred_check
        %p1154 = pneg %p1153
      $region94: #{ae_forward.1} parent=5 // pred_check_branch
        %1156 = sbr.rel (%p1154) target = $region96
      $region95: #{ae_forward.1} parent=5 // pred_region
        %s1157 = ssub.s32 %s31, 2
        // Predicated region
        $region97: #{ae_forward.1} parent=95 // pred_check
          %p1158 = pneg %p338
        $region98: #{ae_forward.1} parent=95 // pred_check_branch
          %1160 = sbr.rel (%p1158) target = $region100
        $region99: #{ae_forward.1} parent=95 // pred_region
          %s1161 = sand.u32 %s323, 1
          %s1162 = scalar_lea.sflag [#allocation4], %s1161
          %s1163 = sand.u32 %s323, 1
          %s1164 = smul.addr %s1163, 16
          %s1165 = scalar_lea.vmem [#allocation8], %s1164
          %1166 = dma.done %s1162, 256
        $region100: #{ae_forward.1} parent=95 // pred_fallthru
          _
        // Predicated region
        $region101: #{ae_forward.1} parent=95 // pred_check
          %p1167 = pneg %p364
        $region102: #{ae_forward.1} parent=95 // pred_check_branch
          %1169 = sbr.rel (%p1167) target = $region104
        $region103: #{ae_forward.1} parent=95 // pred_region
          %s1170 = sand.u32 %s349, 1
          %s1171 = scalar_lea.sflag [#allocation10], %s1170
          %s1172 = sand.u32 %s349, 1
          %s1173 = smul.addr %s1172, 8
          %s1174 = scalar_lea.vmem [#allocation9], %s1173
          %1175 = dma.done %s1171, 128
        $region104: #{ae_forward.1} parent=95 // pred_fallthru
          _
      $region96: #{ae_forward.1} parent=5 // pred_fallthru
        _
    $region6: #{ae_forward.1} parent=1 // loop_footer
      %s35 = sadd.s32 1, %s31
    $region7: #{ae_forward.1} parent=1 // loop_footer_branch
      %30 = sbr.rel target = $region3
    $region8: #{ae_forward.1} parent=1 // loop_exit
      _
    %1176 = vsyncpa [#allocation3], 1
    %s1177 = scalar_lea.sflag [#allocation3], 1
    %1178 = vsyncpa %s1177, 1
    %1179 = vsyncpa [#allocation6], 1
    %1180 = vsyncpa [#allocation4], 1
    %s1181 = scalar_lea.sflag [#allocation4], 1
    %1182 = vsyncpa %s1181, 1
    %1183 = vsyncpa [#allocation10], 1
    %s1184 = scalar_lea.sflag [#allocation10], 1
    %1185 = vsyncpa %s1184, 1

</llo_original>
